<compile_context>
chip_gen: v6e
topology: v6e:2x2x1
jax: 0.10.0
libtpu: 0.0.40
codegen_flags: <defaults>
</compile_context>

<pallas_src>
from functools import partial
from math import sqrt

import jax
import jax.numpy as jnp
from jax import lax
from jax.experimental import pallas as pl
from jax.experimental.pallas import tpu as pltpu


# ----------------------------------------------------------------------------
# helpers
# ----------------------------------------------------------------------------
def _pick_tile(n, preferred, align):
    """Largest tile <= preferred that divides n and is `align`-aligned.

    Falls back to the full dimension (always legal for a BlockSpec) when no
    such divisor exists or when n <= preferred.
    """
    if n <= preferred:
        return n
    t = (preferred // align) * align
    while t >= align:
        if n % t == 0:
            return t
        t -= align
    return n


# ----------------------------------------------------------------------------
# tiled linear (GEMM + bias) kernel: out = x @ w + b
#   grid = (row_tiles, n_tiles, k_tiles); K is the trailing "arbitrary"
#   reduction axis with an f32 VMEM accumulator (pl.when init / finalize).
#   Operands are expected in bf16; accumulation is f32.
# ----------------------------------------------------------------------------
def _linear_kernel(x_ref, w_ref, b_ref, o_ref, acc_ref):
    k = pl.program_id(2)

    @pl.when(k == 0)
    def _():
        acc_ref[...] = jnp.zeros(acc_ref.shape, dtype=acc_ref.dtype)

    acc_ref[...] += jnp.dot(
        x_ref[...], w_ref[...], preferred_element_type=jnp.float32
    )

    @pl.when(k == pl.num_programs(2) - 1)
    def _():
        o_ref[...] = (acc_ref[...] + b_ref[...].astype(jnp.float32)).astype(
            o_ref.dtype
        )


def pallas_linear(x, w, b, *, out_dtype=None, row_tile=512, n_tile=512,
                  k_tile=512):
    R, K = x.shape
    Kw, N = w.shape
    assert K == Kw, (K, Kw)
    out_dtype = out_dtype or x.dtype

    tr = _pick_tile(R, row_tile, 8)     # sublane-aligned row tile
    tn = _pick_tile(N, n_tile, 128)     # lane-aligned output tile
    tk = _pick_tile(K, k_tile, 128)     # lane-aligned K tile
    grid = (R // tr, N // tn, K // tk)

    return pl.pallas_call(
        _linear_kernel,
        out_shape=jax.ShapeDtypeStruct((R, N), out_dtype),
        grid_spec=pltpu.PrefetchScalarGridSpec(
            num_scalar_prefetch=0,
            grid=grid,
            in_specs=[
                pl.BlockSpec((tr, tk), lambda i, j, kk: (i, kk)),
                pl.BlockSpec((tk, tn), lambda i, j, kk: (kk, j)),
                pl.BlockSpec((1, tn), lambda i, j, kk: (0, j)),
            ],
            out_specs=pl.BlockSpec((tr, tn), lambda i, j, kk: (i, j)),
            scratch_shapes=[pltpu.VMEM((tr, tn), jnp.float32)],
        ),
        compiler_params=pltpu.CompilerParams(
            dimension_semantics=("parallel", "parallel", "arbitrary")
        ),
    )(x, w, b.reshape(1, N))


# ----------------------------------------------------------------------------
# multi-head flash attention kernel (online softmax, no [L, S] score matrix)
#   q: [B, L, H*dk], k: [B, S, H*dk], v: [B, S, H*dv]  (head-interleaved, the
#   natural projection layout -> no HBM transposes). All heads are processed
#   per grid step via an unrolled static loop over lane slices.
#   Softmax scale is already folded into the Q projection weights.
# ----------------------------------------------------------------------------
def _flash_mh_kernel(q_ref, k_ref, v_ref, o_ref, m_sc, l_sc, acc_sc, *,
                     n_heads, dk, dv):
    kv_idx = pl.program_id(2)

    @pl.when(kv_idx == 0)
    def _():
        m_sc[...] = jnp.full(m_sc.shape, -jnp.inf, dtype=m_sc.dtype)
        l_sc[...] = jnp.zeros(l_sc.shape, dtype=l_sc.dtype)
        acc_sc[...] = jnp.zeros(acc_sc.shape, dtype=acc_sc.dtype)

    for h in range(n_heads):                       # static, unrolled
        q_h = q_ref[0, :, h * dk:(h + 1) * dk]     # (tq, dk)  bf16
        k_h = k_ref[0, :, h * dk:(h + 1) * dk]     # (tk, dk)  bf16
        v_h = v_ref[0, :, h * dv:(h + 1) * dv]     # (tk, dv)  bf16

        # q @ k^T without materializing a transposed K block (no XLU vxpose):
        s = lax.dot_general(
            q_h, k_h,
            dimension_numbers=(((1,), (1,)), ((), ())),
            preferred_element_type=jnp.float32,
        )                                          # (tq, tk) f32

        m_prev = m_sc[:, h:h + 1]                               # (tq, 1)
        m_new = jnp.maximum(m_prev, jnp.max(s, axis=-1, keepdims=True))
        alpha = jnp.exp(m_prev - m_new)                         # (tq, 1)
        p = jnp.exp(s - m_new)                                  # (tq, tk) f32

        # l is stored broadcast across each head's dv lanes so the final
        # normalization / store is a single lane-dense op.
        l_sc[:, h * dv:(h + 1) * dv] = (
            alpha * l_sc[:, h * dv:(h + 1) * dv]
            + jnp.sum(p, axis=-1, keepdims=True)
        )
        acc_sc[:, h * dv:(h + 1) * dv] = (
            alpha * acc_sc[:, h * dv:(h + 1) * dv]
            + jnp.dot(p.astype(v_h.dtype), v_h,
                      preferred_element_type=jnp.float32)
        )
        m_sc[:, h:h + 1] = m_new

    @pl.when(kv_idx == pl.num_programs(2) - 1)
    def _():
        inv_l = pl.reciprocal(l_sc[...], approx=True)           # EUP slot
        o_ref[0] = (acc_sc[...] * inv_l).astype(o_ref.dtype)    # lane-dense


def flash_attention(q, k, v, *, n_heads, q_tile=512, kv_tile=512):
    """q: [B, L, H*dk], k: [B, S, H*dk], v: [B, S, H*dv] -> [B, L, H*dv]."""
    B, Lq, QD = q.shape
    Bk, S, KD = k.shape
    Bv, Sv, VD = v.shape
    assert B == Bk == Bv and S == Sv and QD == KD
    dk = QD // n_heads
    dv = VD // n_heads

    # tq bounds per-step VMEM (blocks span all heads: ~tq * d_model per
    # operand); tk is the lane dim of the score tile -> keep it 128-aligned.
    tq = _pick_tile(Lq, q_tile, 8)
    tk = _pick_tile(S, kv_tile, 128)
    grid = (B, Lq // tq, S // tk)

    kernel = partial(_flash_mh_kernel, n_heads=n_heads, dk=dk, dv=dv)
    return pl.pallas_call(
        kernel,
        out_shape=jax.ShapeDtypeStruct((B, Lq, VD), q.dtype),
        grid_spec=pltpu.PrefetchScalarGridSpec(
            num_scalar_prefetch=0,
            grid=grid,
            in_specs=[
                pl.BlockSpec((1, tq, QD), lambda b, qi, ki: (b, qi, 0)),
                pl.BlockSpec((1, tk, KD), lambda b, qi, ki: (b, ki, 0)),
                pl.BlockSpec((1, tk, VD), lambda b, qi, ki: (b, ki, 0)),
            ],
            # output block constant across the kv axis -> stays resident in
            # VMEM until the reduction finishes
            out_specs=pl.BlockSpec((1, tq, VD), lambda b, qi, ki: (b, qi, 0)),
            scratch_shapes=[
                pltpu.VMEM((tq, n_heads), jnp.float32),       # running max m
                pltpu.VMEM((tq, n_heads * dv), jnp.float32),  # running sum l
                pltpu.VMEM((tq, n_heads * dv), jnp.float32),  # f32 accumulator
            ],
        ),
        compiler_params=pltpu.CompilerParams(
            dimension_semantics=("parallel", "parallel", "arbitrary")
        ),
    )(q, k, v)


# ----------------------------------------------------------------------------
# module wrapper (parameters + forward)
# ----------------------------------------------------------------------------
def _torch_linear_init(key, fan_in, fan_out):
    kw, kb = jax.random.split(key)
    bound = 1.0 / sqrt(fan_in)
    w = jax.random.uniform(kw, (fan_in, fan_out), dtype=jnp.float32,
                           minval=-bound, maxval=bound)
    b = jax.random.uniform(kb, (fan_out,), dtype=jnp.float32,
                           minval=-bound, maxval=bound)
    return w, b


class AttentionLayerXjtPallas:
    def __init__(self, d_model, n_heads, d_keys=None, d_values=None, *,
                 key, compute_dtype=jnp.bfloat16):
        d_keys = d_keys or d_model // n_heads
        d_values = d_values or d_model // n_heads
        self.d_model = d_model
        self.n_heads = n_heads
        self.d_keys = d_keys
        self.d_values = d_values
        self.compute_dtype = compute_dtype

        kq, kk, kv, ko = jax.random.split(key, 4)
        wq, bq = _torch_linear_init(kq, d_model, n_heads * d_keys)
        wk, bk = _torch_linear_init(kk, d_model, n_heads * d_keys)
        wv, bv = _torch_linear_init(kv, d_model, n_heads * d_values)
        wo, bo = _torch_linear_init(ko, n_heads * d_values, d_model)

        # Fold 1/sqrt(d_k) into the Q projection (avoids an O(L*S) scale pass
        # on the scores). Weights stored in bf16 (MXU operands), biases in f32
        # (added to the f32 accumulator).
        scale = 1.0 / sqrt(d_keys)
        self.w_q = (wq * scale).astype(compute_dtype)
        self.b_q = (bq * scale).astype(jnp.float32)
        self.w_k = wk.astype(compute_dtype)
        self.b_k = bk.astype(jnp.float32)
        self.w_v = wv.astype(compute_dtype)
        self.b_v = bv.astype(jnp.float32)
        self.w_out = wo.astype(compute_dtype)
        self.b_out = bo.astype(jnp.float32)
        # NOTE: the PyTorch module constructs self.norm = nn.LayerNorm(d_model)
        # but never uses it in forward(), so it is intentionally omitted here.

    def __call__(self, x_inter, x_intra, attn_mask=None):
        # TODO(synk): `inner_attention` / `attn_mask` semantics are not defined
        # by the module; this implements unmasked scaled-dot-product attention
        # (queries from the inter stream, keys/values from the intra stream)
        # and returns None for the attention weights.
        B, L, M = x_inter.shape
        Bi, S, Mi = x_intra.shape
        assert (B, M) == (Bi, Mi)
        H, dk, dv = self.n_heads, self.d_keys, self.d_values
        cd = self.compute_dtype

        xq = x_inter.reshape(B * L, M).astype(cd)
        xkv = x_intra.reshape(Bi * S, Mi).astype(cd)

        # Separate Q / K / V GEMMs (no stream concat, no output slicing);
        # outputs stay in the head-interleaved [*, H*d] layout the flash
        # kernel consumes directly (no HBM transposes).
        q = pallas_linear(xq, self.w_q, self.b_q, out_dtype=cd)
        k = pallas_linear(xkv, self.w_k, self.b_k, out_dtype=cd)
        v = pallas_linear(xkv, self.w_v, self.b_v, out_dtype=cd)

        q = q.reshape(B, L, H * dk)
        k = k.reshape(Bi, S, H * dk)
        v = v.reshape(Bi, S, H * dv)

        o = flash_attention(q, k, v, n_heads=H)        # [B, L, H*dv] bf16
        out = pallas_linear(o.reshape(B * L, H * dv), self.w_out, self.b_out,
                            out_dtype=x_inter.dtype)
        return out.reshape(B, L, self.d_model), None


# ----------------------------------------------------------------------------
# pure-JAX reference (mirrors the kernel's bf16 operand / f32 accumulate math)
# ----------------------------------------------------------------------------
def _reference_forward(layer, x_inter, x_intra):
    B, L, M = x_inter.shape
    _, S, _ = x_intra.shape
    H, dk, dv = layer.n_heads, layer.d_keys, layer.d_values
    f32 = jnp.float32
    cd = layer.compute_dtype

    xq = x_inter.reshape(B * L, M).astype(cd)
    xkv = x_intra.reshape(-1, M).astype(cd)
    q = (jnp.dot(xq, layer.w_q, preferred_element_type=f32) + layer.b_q).astype(cd)
    k = (jnp.dot(xkv, layer.w_k, preferred_element_type=f32) + layer.b_k).astype(cd)
    v = (jnp.dot(xkv, layer.w_v, preferred_element_type=f32) + layer.b_v).astype(cd)

    q = q.reshape(B, L, H, dk).astype(f32)
    k = k.reshape(B, S, H, dk).astype(f32)
    v = v.reshape(B, S, H, dv).astype(f32)
    s = jnp.einsum("blhe,bshe->bhls", q, k)          # scale folded into W_q/b_q
    p = jax.nn.softmax(s, axis=-1)
    o = jnp.einsum("bhls,bshd->blhd", p, v).reshape(B * L, H * dv).astype(cd)
    out = jnp.dot(o, layer.w_out, preferred_element_type=f32) + layer.b_out
    return out.reshape(B, L, M)


# ----------------------------------------------------------------------------
# demo / smoke test
# ----------------------------------------------------------------------------
if __name__ == "__main__":
    key = jax.random.PRNGKey(0)
    k_inter, k_intra, k_params = jax.random.split(key, 3)

    B, L, d_model, n_heads = 2, 8, 32, 4
    x_inter = jax.random.normal(k_inter, (B, L, d_model), dtype=jnp.float32)
    x_intra = jax.random.normal(k_intra, (B, L, d_model), dtype=jnp.float32)

    layer = AttentionLayerXjtPallas(d_model, n_heads, key=k_params)

    out, attn = layer(x_inter, x_intra, attn_mask=None)
    out = jax.block_until_ready(out)

    ref = jax.block_until_ready(_reference_forward(layer, x_inter, x_intra))
    assert out.shape == (B, L, d_model)
    max_err = float(jnp.max(jnp.abs(out - ref)))
    assert max_err < 3e-2, f"mismatch vs reference: max abs err {max_err}"

    print("KERNEL_OK")
</pallas_src>

<mosaic_0001>
module attributes {stable_mosaic.version = 11 : i64} {
  func.func @_linear_kernel(%arg0: i32, %arg1: i32, %arg2: i32, %arg3: memref<16x32xbf16, #tpu.memory_space<vmem>>, %arg4: memref<32x32xbf16, #tpu.memory_space<vmem>>, %arg5: memref<1x32xf32, #tpu.memory_space<vmem>>, %arg6: memref<16x32xbf16, #tpu.memory_space<vmem>>, %arg7: memref<16x32xf32, #tpu.memory_space<vmem>>) attributes {dimension_semantics = [#tpu.dimension_semantics<parallel>, #tpu.dimension_semantics<parallel>, #tpu.dimension_semantics<arbitrary>], iteration_bounds = array<i64: 1, 1, 1>, scalar_prefetch = 0 : i64, scratch_operands = 1 : i64, tpu.core_type = #tpu.core_type<tc>, window_params = [{transform_indices = @transform_0, window_bounds = array<i64: 16, 32>}, {transform_indices = @transform_1, window_bounds = array<i64: 32, 32>}, {transform_indices = @transform_2, window_bounds = array<i64: 1, 32>}, {transform_indices = @transform_3, window_bounds = array<i64: 16, 32>}]} {
    %c0_i32 = arith.constant 0 : i32
    %0 = arith.cmpi eq, %arg2, %c0_i32 : i32
    %1 = arith.extui %0 : i1 to i32
    %c0_i32_0 = arith.constant 0 : i32
    %2 = arith.cmpi ne, %1, %c0_i32_0 : i32
    scf.if %2 {
      %cst_10 = arith.constant 0.000000e+00 : f32
      %12 = vector.broadcast %cst_10 : f32 to vector<16x32xf32>
      %c0_11 = arith.constant 0 : index
      %c0_12 = arith.constant 0 : index
      %13 = vector.load %arg7[%c0_11, %c0_12] : memref<16x32xf32, #tpu.memory_space<vmem>>, vector<16x32xf32>
      tpu.vector_store %arg7[%c0_11, %c0_12], %12 {strides = array<i32>} : memref<16x32xf32, #tpu.memory_space<vmem>>, vector<16x32xf32>,
    } else {
    }
    %c0 = arith.constant 0 : index
    %c0_1 = arith.constant 0 : index
    %3 = vector.load %arg7[%c0, %c0_1] : memref<16x32xf32, #tpu.memory_space<vmem>>, vector<16x32xf32>
    %c0_2 = arith.constant 0 : index
    %c0_3 = arith.constant 0 : index
    %4 = vector.load %arg3[%c0_2, %c0_3] : memref<16x32xbf16, #tpu.memory_space<vmem>>, vector<16x32xbf16>
    %c0_4 = arith.constant 0 : index
    %c0_5 = arith.constant 0 : index
    %5 = vector.load %arg4[%c0_4, %c0_5] : memref<32x32xbf16, #tpu.memory_space<vmem>>, vector<32x32xbf16>
    %cst = arith.constant dense<0.000000e+00> : vector<16x32xf32>
    %6 = tpu.matmul %4, %5, %cst {dimension_numbers = #tpu.dot_dimension_numbers<[1], [0], [0], [1], [0, 0, 1, 1], [], []>} : vector<16x32xbf16>, vector<32x32xbf16>, vector<16x32xf32> -> vector<16x32xf32>
    %7 = arith.addf %3, %6 : vector<16x32xf32>
    %c0_6 = arith.constant 0 : index
    %c0_7 = arith.constant 0 : index
    %8 = vector.load %arg7[%c0_6, %c0_7] : memref<16x32xf32, #tpu.memory_space<vmem>>, vector<16x32xf32>
    tpu.vector_store %arg7[%c0_6, %c0_7], %7 {strides = array<i32>} : memref<16x32xf32, #tpu.memory_space<vmem>>, vector<16x32xf32>,
    %c0_i32_8 = arith.constant 0 : i32
    %9 = arith.cmpi eq, %arg2, %c0_i32_8 : i32
    %10 = arith.extui %9 : i1 to i32
    %c0_i32_9 = arith.constant 0 : i32
    %11 = arith.cmpi ne, %10, %c0_i32_9 : i32
    scf.if %11 {
      %c0_10 = arith.constant 0 : index
      %c0_11 = arith.constant 0 : index
      %12 = vector.load %arg7[%c0_10, %c0_11] : memref<16x32xf32, #tpu.memory_space<vmem>>, vector<16x32xf32>
      %c0_12 = arith.constant 0 : index
      %c0_13 = arith.constant 0 : index
      %13 = vector.load %arg5[%c0_12, %c0_13] : memref<1x32xf32, #tpu.memory_space<vmem>>, vector<1x32xf32>
      %14 = vector.broadcast %13 : vector<1x32xf32> to vector<16x32xf32>
      %15 = arith.addf %12, %14 : vector<16x32xf32>
      %16 = arith.truncf %15 : vector<16x32xf32> to vector<16x32xbf16>
      %c0_14 = arith.constant 0 : index
      %c0_15 = arith.constant 0 : index
      %17 = vector.load %arg6[%c0_14, %c0_15] : memref<16x32xbf16, #tpu.memory_space<vmem>>, vector<16x32xbf16>
      tpu.vector_store %arg6[%c0_14, %c0_15], %16 {strides = array<i32>} : memref<16x32xbf16, #tpu.memory_space<vmem>>, vector<16x32xbf16>,
    } else {
    }
    return
  }
  func.func @transform_0(%arg0: i32, %arg1: i32, %arg2: i32) -> (i32, i32) {
    %c0_i32 = arith.constant 0 : i32
    return %arg0, %arg2 : i32, i32
  }
  func.func @transform_1(%arg0: i32, %arg1: i32, %arg2: i32) -> (i32, i32) {
    %c0_i32 = arith.constant 0 : i32
    return %arg2, %arg1 : i32, i32
  }
  func.func @transform_2(%arg0: i32, %arg1: i32, %arg2: i32) -> (i32, i32) {
    %c0_i32 = arith.constant 0 : i32
    %c0_i32_0 = arith.constant 0 : i32
    return %c0_i32, %arg1 : i32, i32
  }
  func.func @transform_3(%arg0: i32, %arg1: i32, %arg2: i32) -> (i32, i32) {
    %c0_i32 = arith.constant 0 : i32
    return %arg0, %arg1 : i32, i32
  }
}

</mosaic_0001>

<llo_original>
// kernel: tpu_custom_call.1
$region0: #{tpu_custom_call.1}
  #allocation0 [shape = 'u32[]', space=smem, size = 0x4, offset = 0x4, fixed_abs, tag = 'smem constant byte address 0x4 - core index']
  #allocation1 [shape = 'u32[144,128]{1,0:T(1,128)}', space=vmem, size = 0x12000, scoped, tag = 'internal scratch']
  #allocation2 [shape = 'f32[16,32]{1,0:T(8,128)}', space=vmem, size = 0x2000, scoped, tag = 'scratch operand']
  %s0 = inlined_call_operand.hbm [shape: bf16[16,32], index: 0, kind: input, shape index: {}]
  %s1 = inlined_call_operand.hbm [shape: bf16[32,32], index: 1, kind: input, shape index: {}]
  %s2 = inlined_call_operand.vmem [shape: f32[1,32], index: 2, kind: input, shape index: {}]
  %s3 = inlined_call_operand.hbm [shape: bf16[16,32], index: 3, kind: output, shape index: {}]
  %s4 = sld [smem:[#allocation0]]
  $region38: #{tpu_custom_call.1} parent=0
    _
  %s6 = ssub.s32 1, %s4
  %s7 = scalar_select 0, %s6, %s4
  $region1: #{tpu_custom_call.1} parent=0
    #allocation3 [shape = 'u8[4096]{0}', space=vmem, size = 0x1000, scoped, tag = 'input window, operand 0, single buffered']
    #allocation4 [shape = 's32[1]{0}', space=sflag, size = 0x4, scoped, tag = 'scoped memory for tpu_custom_call.1']
    #allocation5 [shape = 's32[1]{0}', space=sflag, size = 0x4, scoped, tag = 'scoped memory for tpu_custom_call.1']
    #allocation6 [shape = 'u8[8192]{0}', space=vmem, size = 0x2000, scoped, tag = 'input window, operand 1, single buffered']
    #allocation7 [shape = 's32[1]{0}', space=sflag, size = 0x4, scoped, tag = 'scoped memory for tpu_custom_call.1']
    #allocation8 [shape = 'u8[4096]{0}', space=vmem, size = 0x1000, scoped, tag = 'output window, operand 0, single buffered']
    %8 = vsyncpa [#allocation4], 0
    %9 = vsyncpa [#allocation7], 0
    %10 = vsyncpa [#allocation5], 0
    // Predicated region
    $region2: #{tpu_custom_call.1} parent=1 // pred_check
      _
    $region3: #{tpu_custom_call.1} parent=1 // pred_check_branch
      %12 = sbr.rel (0) target = $region5
    $region4: #{tpu_custom_call.1} parent=1 // pred_region
      %s14 = ssub.s32 128, 128
      %15 = vsyncadd [#allocation4], %s14
      %s16 = sshll.u32 [#allocation3], 4
      %s17 = int_to_ptr.vmem [resolvable:$true] %s16
      %22 = dma.hbm_to_vmem [thread:$0]  %s0, 128, %s17, [#allocation4], 64, 64, 4
    $region5: #{tpu_custom_call.1} parent=1 // pred_fallthru
      _
    // Predicated region
    $region6: #{tpu_custom_call.1} parent=1 // pred_check
      _
    $region7: #{tpu_custom_call.1} parent=1 // pred_check_branch
      %24 = sbr.rel (0) target = $region9
    $region8: #{tpu_custom_call.1} parent=1 // pred_region
      %s26 = ssub.s32 256, 256
      %27 = vsyncadd [#allocation7], %s26
      %s28 = sshll.u32 [#allocation6], 4
      %s29 = int_to_ptr.vmem [resolvable:$true] %s28
      %34 = dma.hbm_to_vmem [thread:$0]  %s1, 256, %s29, [#allocation7], 64, 64, 4
    $region9: #{tpu_custom_call.1} parent=1 // pred_fallthru
      _
    // Predicated region
    $region10: #{tpu_custom_call.1} parent=1 // pred_check
      _
    $region11: #{tpu_custom_call.1} parent=1 // pred_check_branch
      %36 = sbr.rel (0) target = $region13
    $region12: #{tpu_custom_call.1} parent=1 // pred_region
      _
    $region13: #{tpu_custom_call.1} parent=1 // pred_fallthru
      _
    // Predicated region
    $region14: #{tpu_custom_call.1} parent=1 // pred_check
      _
    $region15: #{tpu_custom_call.1} parent=1 // pred_check_branch
      %38 = sbr.rel (0) target = $region17
    $region16: #{tpu_custom_call.1} parent=1 // pred_region
      %39 = dma.done [#allocation4], 128
    $region17: #{tpu_custom_call.1} parent=1 // pred_fallthru
      _
    // Predicated region
    $region18: #{tpu_custom_call.1} parent=1 // pred_check
      _
    $region19: #{tpu_custom_call.1} parent=1 // pred_check_branch
      %41 = sbr.rel (0) target = $region21
    $region20: #{tpu_custom_call.1} parent=1 // pred_region
      %42 = dma.done [#allocation7], 256
    $region21: #{tpu_custom_call.1} parent=1 // pred_fallthru
      _
    %p44 = scmp.eq.s32.totalorder 0, 0
    // Predicated region
    $region22: #{tpu_custom_call.1} parent=1 // pred_check
      %p45 = pneg %p44
    $region23: #{tpu_custom_call.1} parent=1 // pred_check_branch
      %47 = sbr.rel (%p45) target = $region25
    $region24: #{tpu_custom_call.1} parent=1 // pred_region
      %vm48 = vcmask 261120
      %49 = vst.msk [vmem:[#allocation2] sm:$0xff] %vm48, 0.0
      %50 = vst.msk [vmem:[#allocation2 + $0x8] sm:$0xff] %vm48, 0.0
    $region25: #{tpu_custom_call.1} parent=1 // pred_fallthru
      _
    %v51 = vld [vmem:[#allocation2] sm:$0xff]
    %v52 = vld [vmem:[#allocation2 + $0x8] sm:$0xff]
    %v53 = vld [vmem:[#allocation3] sm:$0xf]
    %v54 = vld [vmem:[#allocation3 + $0x4] sm:$0xf]
    %v55 = vld [vmem:[#allocation6] sm:$0xf]
    %v56 = vld [vmem:[#allocation6 + $0x4] sm:$0xf]
    %v57 = vld [vmem:[#allocation6 + $0x8] sm:$0xf]
    %v58 = vld [vmem:[#allocation6 + $0xc] sm:$0xf]
    %v61 = vunpack.c.l.b16 %v53
    %v62 = vunpack.c.l.b16 %v54
    %v63 = vpack.c.b16 %v62, %v61
    %v68 = vunpack.c.l.b16 %v55
    %v69 = vunpack.c.l.b16 %v56
    %v70 = vunpack.c.l.b16 %v57
    %v71 = vunpack.c.l.b16 %v58
    %v72 = vpack.c.b16 %v69, %v68
    %v73 = vpack.c.b16 %v71, %v70
    %vm76 = vcmask 261120
    %v78 = vsel %vm76, %v63, 0
    %80 = vmatprep.subr.bf16.mxu0 0
    %81 = vmatpush1.bf16.msra.mxu0 0
    %82 = vmatprep.subr.bf16.mxu0 0
    %83 = vmatpush1.bf16.msra.mxu0 0
    %84 = vmatprep.subr.bf16.mxu0 0
    %85 = vmatpush1.bf16.msra.mxu0 0
    %86 = vmatprep.subr.bf16.mxu0 0
    %87 = vmatpush1.bf16.msra.mxu0 0
    %88 = vmatprep.subr.bf16.mxu0 0
    %89 = vmatpush1.bf16.msra.mxu0 0
    %90 = vmatprep.subr.bf16.mxu0 0
    %91 = vmatpush1.bf16.msra.mxu0 0
    %92 = vmatprep.subr.bf16.mxu0 0
    %93 = vmatpush1.bf16.msra.mxu0 %v73
    %94 = vmatprep.subr.bf16.mxu0 0
    %95 = vmatpush1.bf16.msra.mxu0 %v72
    %96 = vmatprep.subr.bf16.mxu0 0
    %97 = vmatpush2.bf16.msra.mxu0 0
    %98 = vmatprep.subr.bf16.mxu0 0
    %99 = vmatpush2.bf16.msra.mxu0 0
    %100 = vmatprep.subr.bf16.mxu0 0
    %101 = vmatpush2.bf16.msra.mxu0 0
    %102 = vmatprep.subr.bf16.mxu0 0
    %103 = vmatpush2.bf16.msra.mxu0 0
    %104 = vmatprep.subr.bf16.mxu0 0
    %105 = vmatpush2.bf16.msra.mxu0 0
    %106 = vmatprep.subr.bf16.mxu0 0
    %107 = vmatpush2.bf16.msra.mxu0 0
    %108 = vmatprep.subr.bf16.mxu0 0
    %109 = vmatpush2.bf16.msra.mxu0 0
    %110 = vmatprep.subr.bf16.mxu0 0
    %111 = vmatpush2.bf16.msra.mxu0 0
    %112 = vmatprep.mubr.bf16.mxu0 0
    %113 = vmatmul.mubr.bf16.gmra.mxu0 %v78
    %v114 = vpop.f32.mrf.mxu0
    %v115 = vadd.f32 0.0, %v114
    %v116 = vpop.f32.mrf.mxu0
    %v117 = vpop.f32.mrf.mxu0
    %v118 = vadd.f32 0.0, %v117
    %v119 = vpop.f32.mrf.mxu0
    %120 = vdwg.mxu0
    %v121 = vadd.f32 %v51, %v115
    %v122 = vadd.f32 %v52, %v118
    %123 = vst.msk [vmem:[#allocation2] sm:$0xff] %vm76, %v121
    %124 = vst.msk [vmem:[#allocation2 + $0x8] sm:$0xff] %vm76, %v122
    // Predicated region
    $region26: #{tpu_custom_call.1} parent=1 // pred_check
      %p125 = pneg %p44
    $region27: #{tpu_custom_call.1} parent=1 // pred_check_branch
      %127 = sbr.rel (%p125) target = $region29
    $region28: #{tpu_custom_call.1} parent=1 // pred_region
      %v128 = vld [vmem:[#allocation2] sm:$0xff]
      %v129 = vld [vmem:[#allocation2 + $0x8] sm:$0xff]
      %v130 = vld [vmem:[%s2] sm:$0x1]
      %v132 = vlaneseq
      %v133 = vshrl.u32 %v132, 7
      %v134 = vsub.s32 0, %v133
      %v135 = vrot.slane %v130, %v134
      %v137 = vadd.f32 %v128, %v135
      %v138 = vadd.f32 %v129, %v135
      %v139 = vpack.c.bf16 %v138, %v137
      %v141 = vunpack.c.l.b16 %v139
      %v142 = vunpack.c.h.b16 %v139
      %v143 = vpack.c.b16 %v141, %v141
      %v144 = vpack.c.b16 %v142, %v142
      %vm147 = vcmask 257024
      %148 = vst.msk [vmem:[#allocation8] sm:$0xf] %vm147, %v143
      %149 = vst.msk [vmem:[#allocation8 + $0x4] sm:$0xf] %vm147, %v144
    $region29: #{tpu_custom_call.1} parent=1 // pred_fallthru
      _
    // Predicated region
    $region30: #{tpu_custom_call.1} parent=1 // pred_check
      _
    $region31: #{tpu_custom_call.1} parent=1 // pred_check_branch
      %151 = sbr.rel (0) target = $region33
    $region32: #{tpu_custom_call.1} parent=1 // pred_region
      %s153 = ssub.s32 128, 128
      %154 = vsyncadd [#allocation5], %s153
      %s155 = sshll.u32 [#allocation8], 4
      %s156 = int_to_ptr.vmem [resolvable:$true] %s155
      %161 = dma.vmem_to_hbm [thread:$0]  %s156, 128, %s3, [#allocation5], 64, 64, 4
    $region33: #{tpu_custom_call.1} parent=1 // pred_fallthru
      _
    // Predicated region
    $region34: #{tpu_custom_call.1} parent=1 // pred_check
      _
    $region35: #{tpu_custom_call.1} parent=1 // pred_check_branch
      %163 = sbr.rel (0) target = $region37
    $region36: #{tpu_custom_call.1} parent=1 // pred_region
      %164 = dma.done [#allocation5], 128
    $region37: #{tpu_custom_call.1} parent=1 // pred_fallthru
      _
    %165 = vsyncpa [#allocation4], 1
    %166 = vsyncpa [#allocation7], 1
    %167 = vsyncpa [#allocation5], 1

</llo_original>
